<compile_context>
chip_gen: v7x
topology: tpu7x:2x2x1
jax: 0.10.0
libtpu: 0.0.40
codegen_flags: <defaults>
</compile_context>

<pallas_src>
import math

import jax
import jax.numpy as jnp
from jax.experimental import pallas as pl
from jax.experimental.pallas import tpu as pltpu


def _erf(x):
    # Abramowitz & Stegun 7.1.26 rational approximation, |error| <= 1.5e-7.
    # Only mul/add/div/abs/where (VPU) + exp (EUP) -> lowers cleanly in Mosaic.
    p = 0.3275911
    a1, a2, a3, a4, a5 = (0.254829592, -0.284496736, 1.421413741,
                          -1.453152027, 1.061405429)
    ax = jnp.abs(x)
    t = 1.0 / (1.0 + p * ax)  # exact divide on purpose (1e-4 tolerance vs exact-erf reference)
    poly = t * (a1 + t * (a2 + t * (a3 + t * (a4 + t * a5))))
    y = 1.0 - poly * jnp.exp(-ax * ax)
    return jnp.where(x < 0.0, -y, y)


def _gelu_exact(x):
    # PyTorch nn.GELU() default: 0.5 * x * (1 + erf(x / sqrt(2)))
    return 0.5 * x * (1.0 + _erf(x * (1.0 / math.sqrt(2.0))))


def _conv_bn_gelu_kernel(p_ref, w_ref, b_ref, o_ref):
    # p_ref: (1, K9, TL)   im2col patch slab for this (batch, spatial tile), operand dtype
    # w_ref: (Cout, K9)    BN-folded conv weights, operand dtype
    # b_ref: (Cout, 1)     BN-folded bias, f32
    # o_ref: (1, Cout, TL) output tile — lane axis is spatial (TL >= 128, dense stores)
    acc = jnp.dot(w_ref[...], p_ref[0],
                  preferred_element_type=jnp.float32)   # single MXU matmul, f32 accumulate
    y = acc + b_ref[...]                                # (Cout,1) bias broadcast over lanes
    o_ref[0] = _gelu_exact(y).astype(o_ref.dtype)       # fused exact-GELU epilogue (f32)


def _round_up(n, m):
    return (n + m - 1) // m * m


def conv_bn_gelu_pallas(x, params, *, stride=1, padding=1, eps=1e-5,
                        operand_dtype=jnp.float32):
    """x: (B, Cin, H, W) f32 NCHW.  Returns (B, Cout, H_out, W_out) f32, like PyTorch."""
    B, Cin, H, W = x.shape
    w = params["w"]
    Cout, Cin_w, KH, KW = w.shape
    assert Cin == Cin_w

    # ---- fold eval-mode BatchNorm (running stats) into conv weight & bias --------------
    scale = params["gamma"] / jnp.sqrt(params["var"] + eps)            # (Cout,)
    w_eff = w * scale[:, None, None, None]                             # (Cout,Cin,KH,KW)
    b_eff = (params["b"] - params["mean"]) * scale + params["beta"]    # (Cout,)
    k9 = KH * KW * Cin
    # weight matrix (Cout, KH*KW*Cin); column order (dy, dx, c) matches the im2col below
    w_mat = jnp.transpose(w_eff, (0, 2, 3, 1)).reshape(Cout, k9).astype(operand_dtype)
    b2d = b_eff.reshape(Cout, 1).astype(jnp.float32)

    # ---- im2col (tap packing) straight from NCHW — no NHWC transpose needed ------------
    Hp, Wp = H + 2 * padding, W + 2 * padding
    H_out = (Hp - KH) // stride + 1
    W_out = (Wp - KW) // stride + 1
    lout = H_out * W_out
    xp = jnp.pad(x, ((0, 0), (0, 0), (padding, padding), (padding, padding)))
    taps = []
    for dy in range(KH):
        for dx in range(KW):
            tap = xp[:, :,
                     dy:dy + (H_out - 1) * stride + 1:stride,
                     dx:dx + (W_out - 1) * stride + 1:stride]
            taps.append(tap.reshape(B, Cin, lout))
    patches = jnp.concatenate(taps, axis=1)             # (B, 9*Cin, Lout), rows = (dy,dx,c)

    # ---- spatial tiling: pick TL (multiple of 128) against an explicit VMEM budget -----
    in_isz = jnp.dtype(operand_dtype).itemsize
    out_isz = 4  # f32 output

    def _step_bytes(t):
        # double-buffered input tile + double-buffered output tile per grid step
        return 2 * k9 * t * in_isz + 2 * Cout * t * out_isz

    vmem_budget = 24 << 20                       # conservative: fits v7x's 64 MiB VMEM/TC
    tl = min(512, _round_up(lout, 128))          # lane-dense, amortizes ~0.35us/step overhead
    while tl > 128 and _step_bytes(tl) > vmem_budget:
        tl -= 128                                # stay a multiple of 128
    lout_pad = _round_up(lout, tl)
    if lout_pad > lout:
        patches = jnp.pad(patches, ((0, 0), (0, 0), (0, lout_pad - lout)))
    patches = patches.astype(operand_dtype)
    n_tiles = lout_pad // tl

    weight_bytes = k9 * Cout * in_isz + Cout * 4
    vmem_limit = int(min(max(2 * _step_bytes(tl) + weight_bytes + (4 << 20), 16 << 20),
                         28 << 20))

    cost = pl.CostEstimate(
        flops=2 * B * lout * k9 * Cout,
        transcendentals=B * lout * Cout,         # one EUP exp per output element (A&S erf)
        bytes_accessed=(B * k9 * lout_pad * in_isz + k9 * Cout * in_isz
                        + Cout * 4 + B * Cout * lout_pad * out_isz),
    )

    out_flat = pl.pallas_call(
        _conv_bn_gelu_kernel,
        out_shape=jax.ShapeDtypeStruct((B, Cout, lout_pad), jnp.float32),
        grid=(B, n_tiles),
        in_specs=[
            pl.BlockSpec((1, k9, tl), lambda b, t: (b, 0, t)),
            pl.BlockSpec((Cout, k9), lambda b, t: (0, 0)),
            pl.BlockSpec((Cout, 1), lambda b, t: (0, 0)),
        ],
        out_specs=pl.BlockSpec((1, Cout, tl), lambda b, t: (b, 0, t)),
        compiler_params=pltpu.CompilerParams(
            dimension_semantics=("parallel", "parallel"),  # both v7x TCs busy even for B=1
            vmem_limit_bytes=vmem_limit),
        cost_estimate=cost,
    )(patches, w_mat, b2d)

    # Output is already channel-major: drop the zero-padded spatial tail (no-op when
    # lout_pad == lout) and reshape — no crop of padded-width columns, no transpose.
    return out_flat[:, :, :lout].reshape(B, Cout, H_out, W_out)


def conv_bn_gelu_ref(x, params, *, stride=1, padding=1, eps=1e-5):
    """Pure-JAX reference mirroring the PyTorch forward (Conv2d -> BN(eval) -> exact GELU)."""
    y = jax.lax.conv_general_dilated(
        x, params["w"], window_strides=(stride, stride),
        padding=((padding, padding), (padding, padding)),
        dimension_numbers=("NCHW", "OIHW", "NCHW"))
    y = y + params["b"][None, :, None, None]
    scale = params["gamma"] / jnp.sqrt(params["var"] + eps)
    y = (y - params["mean"][None, :, None, None]) * scale[None, :, None, None] \
        + params["beta"][None, :, None, None]
    return jax.nn.gelu(y, approximate=False)


def init_params(key, in_channels, out_channels, kernel_size=3):
    """Deterministic PyTorch-style init: Conv2d uniform(+-1/sqrt(fan_in)), BN running stats."""
    kc, kb, kg, kbe, km, kv = jax.random.split(key, 6)
    fan_in = in_channels * kernel_size * kernel_size
    bound = 1.0 / math.sqrt(fan_in)
    u = lambda k, shape, lo, hi: jax.random.uniform(k, shape, jnp.float32, lo, hi)
    return {
        "w": u(kc, (out_channels, in_channels, kernel_size, kernel_size), -bound, bound),
        "b": u(kb, (out_channels,), -bound, bound),
        "gamma": u(kg, (out_channels,), 0.5, 1.5),
        "beta": jax.random.normal(kbe, (out_channels,), jnp.float32) * 0.1,
        "mean": jax.random.normal(km, (out_channels,), jnp.float32) * 0.1,
        "var": u(kv, (out_channels,), 0.5, 1.5),
    }
    # TODO(synk): training-mode BatchNorm (batch statistics + running-stat update) is not
    # implemented; the kernel implements the eval-mode forward with running stats folded in.


if __name__ == "__main__":
    B, Cin, Cout, H, W = 2, 4, 8, 16, 16

    key = jax.random.PRNGKey(0)
    kx, kp = jax.random.split(key)
    x = jax.random.normal(kx, (B, Cin, H, W), jnp.float32)
    params = init_params(kp, Cin, Cout)

    ref = conv_bn_gelu_ref(x, params)

    # f32-operand path: strict check against the exact reference.
    out = jax.block_until_ready(conv_bn_gelu_pallas(x, params, operand_dtype=jnp.float32))
    assert out.shape == (B, Cout, H, W)
    err = float(jnp.max(jnp.abs(out - ref)))
    assert jnp.allclose(out, ref, atol=1e-4, rtol=1e-4), f"f32 mismatch vs ref, max|d|={err}"

    # bf16-operand path (MXU-native, f32 accumulate): loosened tolerance per review guidance.
    out_bf = jax.block_until_ready(conv_bn_gelu_pallas(x, params, operand_dtype=jnp.bfloat16))
    err_bf = float(jnp.max(jnp.abs(out_bf - ref)))
    assert jnp.allclose(out_bf, ref, atol=5e-2, rtol=5e-2), f"bf16 mismatch vs ref, max|d|={err_bf}"

    print("KERNEL_OK")
</pallas_src>

<mosaic_0001>
module attributes {stable_mosaic.version = 11 : i64} {
  func.func @_conv_bn_gelu_kernel(%arg0: i32, %arg1: i32, %arg2: memref<1x36x256xf32, #tpu.memory_space<vmem>>, %arg3: memref<8x36xf32, #tpu.memory_space<vmem>>, %arg4: memref<8x1xf32, #tpu.memory_space<vmem>>, %arg5: memref<1x8x256xf32, #tpu.memory_space<vmem>>) attributes {dimension_semantics = [#tpu.dimension_semantics<parallel>, #tpu.dimension_semantics<parallel>], iteration_bounds = array<i64: 2, 1>, scalar_prefetch = 0 : i64, scratch_operands = 0 : i64, tpu.core_type = #tpu.core_type<tc>, window_params = [{transform_indices = @transform_0, window_bounds = array<i64: 1, 36, 256>}, {pipeline_mode = #tpu.pipeline_mode<synchronous>, transform_indices = @transform_1, window_bounds = array<i64: 8, 36>}, {pipeline_mode = #tpu.pipeline_mode<synchronous>, transform_indices = @transform_2, window_bounds = array<i64: 8, 1>}, {transform_indices = @transform_3, window_bounds = array<i64: 1, 8, 256>}]} {
    %c0 = arith.constant 0 : index
    %c0_0 = arith.constant 0 : index
    %0 = vector.load %arg3[%c0, %c0_0] : memref<8x36xf32, #tpu.memory_space<vmem>>, vector<8x36xf32>
    %c0_1 = arith.constant 0 : index
    %c0_2 = arith.constant 0 : index
    %c0_3 = arith.constant 0 : index
    %1 = vector.load %arg2[%c0_1, %c0_2, %c0_3] : memref<1x36x256xf32, #tpu.memory_space<vmem>>, vector<1x36x256xf32>
    %2 = vector.shape_cast %1 : vector<1x36x256xf32> to vector<36x256xf32>
    %cst = arith.constant dense<0.000000e+00> : vector<8x256xf32>
    %3 = tpu.matmul %0, %2, %cst {dimension_numbers = #tpu.dot_dimension_numbers<[1], [0], [0], [1], [0, 0, 1, 1], [], []>} : vector<8x36xf32>, vector<36x256xf32>, vector<8x256xf32> -> vector<8x256xf32>
    %c0_4 = arith.constant 0 : index
    %c0_5 = arith.constant 0 : index
    %4 = vector.load %arg4[%c0_4, %c0_5] : memref<8x1xf32, #tpu.memory_space<vmem>>, vector<8x1xf32>
    %5 = vector.broadcast %4 : vector<8x1xf32> to vector<8x256xf32>
    %6 = arith.addf %3, %5 : vector<8x256xf32>
    %cst_6 = arith.constant 5.000000e-01 : f32
    %7 = vector.broadcast %cst_6 : f32 to vector<8x256xf32>
    %8 = arith.mulf %7, %6 : vector<8x256xf32>
    %cst_7 = arith.constant 0.707106769 : f32
    %9 = vector.broadcast %cst_7 : f32 to vector<8x256xf32>
    %10 = arith.mulf %6, %9 : vector<8x256xf32>
    %11 = math.absf %10 : vector<8x256xf32>
    %cst_8 = arith.constant 0.327591091 : f32
    %12 = vector.broadcast %cst_8 : f32 to vector<8x256xf32>
    %13 = arith.mulf %12, %11 : vector<8x256xf32>
    %cst_9 = arith.constant 1.000000e+00 : f32
    %14 = vector.broadcast %cst_9 : f32 to vector<8x256xf32>
    %15 = arith.addf %14, %13 : vector<8x256xf32>
    %cst_10 = arith.constant 1.000000e+00 : f32
    %16 = vector.broadcast %cst_10 : f32 to vector<8x256xf32>
    %17 = arith.divf %16, %15 : vector<8x256xf32>
    %cst_11 = arith.constant 1.06140542 : f32
    %18 = vector.broadcast %cst_11 : f32 to vector<8x256xf32>
    %19 = arith.mulf %17, %18 : vector<8x256xf32>
    %cst_12 = arith.constant -1.45315206 : f32
    %20 = vector.broadcast %cst_12 : f32 to vector<8x256xf32>
    %21 = arith.addf %20, %19 : vector<8x256xf32>
    %22 = arith.mulf %17, %21 : vector<8x256xf32>
    %cst_13 = arith.constant 1.42141378 : f32
    %23 = vector.broadcast %cst_13 : f32 to vector<8x256xf32>
    %24 = arith.addf %23, %22 : vector<8x256xf32>
    %25 = arith.mulf %17, %24 : vector<8x256xf32>
    %cst_14 = arith.constant -0.284496725 : f32
    %26 = vector.broadcast %cst_14 : f32 to vector<8x256xf32>
    %27 = arith.addf %26, %25 : vector<8x256xf32>
    %28 = arith.mulf %17, %27 : vector<8x256xf32>
    %cst_15 = arith.constant 0.254829586 : f32
    %29 = vector.broadcast %cst_15 : f32 to vector<8x256xf32>
    %30 = arith.addf %29, %28 : vector<8x256xf32>
    %31 = arith.mulf %17, %30 : vector<8x256xf32>
    %cst_16 = arith.constant 0.000000e+00 : f32
    %32 = vector.broadcast %cst_16 : f32 to vector<8x256xf32>
    %33 = arith.subf %32, %11 : vector<8x256xf32>
    %34 = arith.mulf %33, %11 : vector<8x256xf32>
    %35 = math.exp %34 : vector<8x256xf32>
    %36 = arith.mulf %31, %35 : vector<8x256xf32>
    %cst_17 = arith.constant 1.000000e+00 : f32
    %37 = vector.broadcast %cst_17 : f32 to vector<8x256xf32>
    %38 = arith.subf %37, %36 : vector<8x256xf32>
    %cst_18 = arith.constant 0.000000e+00 : f32
    %39 = vector.broadcast %cst_18 : f32 to vector<8x256xf32>
    %40 = arith.cmpf olt, %10, %39 : vector<8x256xf32>
    %cst_19 = arith.constant 0.000000e+00 : f32
    %41 = vector.broadcast %cst_19 : f32 to vector<8x256xf32>
    %42 = arith.subf %41, %38 : vector<8x256xf32>
    %43 = arith.select %40, %42, %38 : vector<8x256xi1>, vector<8x256xf32>
    %cst_20 = arith.constant 1.000000e+00 : f32
    %44 = vector.broadcast %cst_20 : f32 to vector<8x256xf32>
    %45 = arith.addf %44, %43 : vector<8x256xf32>
    %46 = arith.mulf %8, %45 : vector<8x256xf32>
    %c0_21 = arith.constant 0 : index
    %c0_22 = arith.constant 0 : index
    %c0_23 = arith.constant 0 : index
    %47 = vector.load %arg5[%c0_21, %c0_22, %c0_23] : memref<1x8x256xf32, #tpu.memory_space<vmem>>, vector<1x8x256xf32>
    %48 = vector.shape_cast %47 : vector<1x8x256xf32> to vector<8x256xf32>
    %49 = vector.shape_cast %46 : vector<8x256xf32> to vector<1x8x256xf32>
    tpu.vector_store %arg5[%c0_21, %c0_22, %c0_23], %49 {strides = array<i32>} : memref<1x8x256xf32, #tpu.memory_space<vmem>>, vector<1x8x256xf32>,
    return
  }
  func.func @transform_0(%arg0: i32, %arg1: i32) -> (i32, i32, i32) {
    %c0_i32 = arith.constant 0 : i32
    %c0_i32_0 = arith.constant 0 : i32
    return %arg0, %c0_i32, %arg1 : i32, i32, i32
  }
  func.func @transform_1(%arg0: i32, %arg1: i32) -> (i32, i32) {
    %c0_i32 = arith.constant 0 : i32
    %c0_i32_0 = arith.constant 0 : i32
    %c0_i32_1 = arith.constant 0 : i32
    return %c0_i32, %c0_i32_0 : i32, i32
  }
  func.func @transform_2(%arg0: i32, %arg1: i32) -> (i32, i32) {
    %c0_i32 = arith.constant 0 : i32
    %c0_i32_0 = arith.constant 0 : i32
    %c0_i32_1 = arith.constant 0 : i32
    return %c0_i32, %c0_i32_0 : i32, i32
  }
  func.func @transform_3(%arg0: i32, %arg1: i32) -> (i32, i32, i32) {
    %c0_i32 = arith.constant 0 : i32
    %c0_i32_0 = arith.constant 0 : i32
    return %arg0, %c0_i32, %arg1 : i32, i32, i32
  }
}

</mosaic_0001>

<llo_original>
// kernel: tpu_custom_call.1
$region0: #{tpu_custom_call.1}
  #allocation0 [shape = 'u32[]', space=smem, size = 0x4, offset = 0x4, fixed_abs, tag = 'smem constant byte address 0x4 - core index']
  #allocation1 [shape = 'u32[144,128]{1,0:T(1,128)}', space=vmem, size = 0x12000, scoped, tag = 'internal scratch']
  %s0 = inlined_call_operand.vmem [shape: f32[2,36,256], index: 0, kind: input, shape index: {}]
  %s1 = inlined_call_operand.vmem [shape: f32[8,36], index: 1, kind: input, shape index: {}]
  %s2 = inlined_call_operand.vmem [shape: f32[8,1], index: 2, kind: input, shape index: {}]
  %s3 = inlined_call_operand.hbm [shape: f32[2,8,256], index: 3, kind: output, shape index: {}]
  %s4 = sld [smem:[#allocation0]]
  $region45: #{tpu_custom_call.1} parent=0
    _
  %s6 = ssub.s32 1, %s4
  %s7 = scalar_select 0, %s6, %s4
  $region1: #{tpu_custom_call.1} parent=0
    #allocation2 [shape = 'u8[16384]{0}', space=vmem, size = 0x4000, scoped, tag = 'output window, operand 0']
    #allocation3 [shape = 's32[2]{0}', space=sflag, size = 0x8, scoped, tag = 'scoped memory for tpu_custom_call.1']
    %8 = vsyncpa [#allocation3], 0
    %s9 = scalar_lea.sflag [#allocation3], 1
    %10 = vsyncpa %s9, 0
    loop: start=0, step=1, limit=4
    $region2: #{tpu_custom_call.1} parent=1 // loop_pre_header
      _
    $region3: #{tpu_custom_call.1} parent=1 // loop_header
      %s12 = sphi 0, %s16
      %p13 = scmp.ge.s32.totalorder %s12, 4
      %s19 = sphi 0, %s31
      %s20 = sphi 0, %s27
      %s21 = sphi 0, %s19
      %s22 = sphi 0, %s20
      %s23 = sphi 0, %s21
      %s24 = sphi 0, %s22
      %s36 = sphi 0, %s38
      %s39 = sphi 0, %s36
      %s40 = sphi 0, %s39
      %s56 = sphi 0, %s40
      %s60 = sphi 0, %s60
      %s62 = sphi 0, %s60
      %s63 = sphi 0, %s62
      %s77 = sphi 0, %s63
      %s81 = sphi 0, %s81
      %s83 = sphi 0, %s81
      %s84 = sphi 0, %s83
      %s98 = sphi 0, %s84
      %s106 = sphi 0, %s108
      %s109 = sphi 0, %s106
      %s110 = sphi 0, %s109
      %s126 = sphi 0, %s110
    $region4: #{tpu_custom_call.1} parent=1 // loop_header_branch
      %15 = sbr.rel (%p13) target = $region8
    $region5: #{tpu_custom_call.1} parent=1 // loop_body
      %s17 = ssub.s32 %s12, 1
      %s18 = ssub.s32 %s12, 2
      %s25 = sadd.s32 1, %s20
      %p26 = scmp.ge.s32.totalorder %s25, 1
      %s27 = scalar_select %p26, 0, %s25
      %s28 = sadd.s32 1, %s19
      %s29 = scalar_select %p26, %s28, %s19
      %p30 = scmp.ge.s32.totalorder %s29, 2
      %s31 = scalar_select %p30, 0, %s29
      %s32 = ssub.s32 %s19, %s31
      %s33 = ssub.s32 %s20, %s27
      %s34 = sor.u32 %s32, %s33
      %p35 = scmp.eq.s32.totalorder %s34, 0
      %s37 = sadd.s32 %s36, 1
      %s38 = scalar_select %p35, %s36, %s37
      %p41 = pneg %p35
      %p42 = scmp.eq.s32.totalorder %s12, 1
      %p43 = por %p41, %p42
      %p44 = scmp.ne.s32.totalorder %s36, %s39
      %p45 = scmp.eq.s32.totalorder %s12, 0
      %p46 = por %p44, %p45
      %p47 = scmp.ne.s32.totalorder %s36, %s39
      %p48 = scmp.eq.s32.totalorder %s17, 1
      %p49 = por %p47, %p48
      %p50 = scmp.ne.s32.totalorder %s39, %s40
      %p51 = scmp.eq.s32.totalorder %s17, 0
      %p52 = por %p50, %p51
      %p53 = scmp.ne.s32.totalorder %s39, %s40
      %p54 = scmp.eq.s32.totalorder %s18, 1
      %p55 = por %p53, %p54
      %p57 = scmp.ne.s32.totalorder %s40, %s56
      %p58 = scmp.eq.s32.totalorder %s18, 0
      %p59 = por %p57, %p58
      %s61 = sadd.s32 %s60, 1
      %p64 = scmp.eq.s32.totalorder %s12, 1
      %p65 = scmp.ne.s32.totalorder %s60, %s62
      %p66 = scmp.eq.s32.totalorder %s12, 0
      %p67 = por %p65, %p66
      %p68 = scmp.ne.s32.totalorder %s60, %s62
      %p69 = scmp.eq.s32.totalorder %s17, 1
      %p70 = por %p68, %p69
      %p71 = scmp.ne.s32.totalorder %s62, %s63
      %p72 = scmp.eq.s32.totalorder %s17, 0
      %p73 = por %p71, %p72
      %p74 = scmp.ne.s32.totalorder %s62, %s63
      %p75 = scmp.eq.s32.totalorder %s18, 1
      %p76 = por %p74, %p75
      %p78 = scmp.ne.s32.totalorder %s63, %s77
      %p79 = scmp.eq.s32.totalorder %s18, 0
      %p80 = por %p78, %p79
      %s82 = sadd.s32 %s81, 1
      %p85 = scmp.eq.s32.totalorder %s12, 1
      %p86 = scmp.ne.s32.totalorder %s81, %s83
      %p87 = scmp.eq.s32.totalorder %s12, 0
      %p88 = por %p86, %p87
      %p89 = scmp.ne.s32.totalorder %s81, %s83
      %p90 = scmp.eq.s32.totalorder %s17, 1
      %p91 = por %p89, %p90
      %p92 = scmp.ne.s32.totalorder %s83, %s84
      %p93 = scmp.eq.s32.totalorder %s17, 0
      %p94 = por %p92, %p93
      %p95 = scmp.ne.s32.totalorder %s83, %s84
      %p96 = scmp.eq.s32.totalorder %s18, 1
      %p97 = por %p95, %p96
      %p99 = scmp.ne.s32.totalorder %s84, %s98
      %p100 = scmp.eq.s32.totalorder %s18, 0
      %p101 = por %p99, %p100
      %s102 = ssub.s32 %s19, %s31
      %s103 = ssub.s32 %s20, %s27
      %s104 = sor.u32 %s102, %s103
      %p105 = scmp.eq.s32.totalorder %s104, 0
      %s107 = sadd.s32 %s106, 1
      %s108 = scalar_select %p105, %s106, %s107
      %p111 = pneg %p105
      %p112 = scmp.eq.s32.totalorder %s12, 1
      %p113 = por %p111, %p112
      %p114 = scmp.ne.s32.totalorder %s106, %s109
      %p115 = scmp.eq.s32.totalorder %s12, 0
      %p116 = por %p114, %p115
      %p117 = scmp.ne.s32.totalorder %s106, %s109
      %p118 = scmp.eq.s32.totalorder %s17, 1
      %p119 = por %p117, %p118
      %p120 = scmp.ne.s32.totalorder %s109, %s110
      %p121 = scmp.eq.s32.totalorder %s17, 0
      %p122 = por %p120, %p121
      %p123 = scmp.ne.s32.totalorder %s109, %s110
      %p124 = scmp.eq.s32.totalorder %s18, 1
      %p125 = por %p123, %p124
      %p127 = scmp.ne.s32.totalorder %s110, %s126
      %p128 = scmp.eq.s32.totalorder %s18, 0
      %p129 = por %p127, %p128
      %p130 = scmp.le.s32.totalorder 1, %s12
      %p131 = scmp.lt.s32.totalorder %s12, 3
      %p132 = pnand %p130, %p131
      %p133 = pneg %p132
      // Predicated region
      $region9: #{tpu_custom_call.1} parent=5 // pred_check
        _
      $region10: #{tpu_custom_call.1} parent=5 // pred_check_branch
        %135 = sbr.rel (%p132) target = $region12
      $region11: #{tpu_custom_call.1} parent=5 // pred_region
        %s136 = ssub.s32 %s12, 1
        // Predicated region
        $region13: #{tpu_custom_call.1} parent=11 // pred_check
          %p137 = pneg %p73
        $region14: #{tpu_custom_call.1} parent=11 // pred_check_branch
          %139 = sbr.rel (%p137) target = $region16
        $region15: #{tpu_custom_call.1} parent=11 // pred_region
          _
        $region16: #{tpu_custom_call.1} parent=11 // pred_fallthru
          _
        // Predicated region
        $region17: #{tpu_custom_call.1} parent=11 // pred_check
          %p140 = pneg %p94
        $region18: #{tpu_custom_call.1} parent=11 // pred_check_branch
          %142 = sbr.rel (%p140) target = $region20
        $region19: #{tpu_custom_call.1} parent=11 // pred_region
          _
        $region20: #{tpu_custom_call.1} parent=11 // pred_fallthru
          _
      $region12: #{tpu_custom_call.1} parent=5 // pred_fallthru
        _
      %p143 = scmp.lt.s32.totalorder %s12, 2
      // Predicated region
      $region21: #{tpu_custom_call.1} parent=5 // pred_check
        %p144 = pneg %p143
      $region22: #{tpu_custom_call.1} parent=5 // pred_check_branch
        %146 = sbr.rel (%p144) target = $region24
      $region23: #{tpu_custom_call.1} parent=5 // pred_region
        // Predicated region
        $region25: #{tpu_custom_call.1} parent=23 // pred_check
          %p147 = pneg %p46
        $region26: #{tpu_custom_call.1} parent=23 // pred_check_branch
          %149 = sbr.rel (%p147) target = $region28
        $region27: #{tpu_custom_call.1} parent=23 // pred_region
          %s150 = smul.u32 2, %s20
          %p151 = scmp.lt.s32.totalorder %s19, 1
          %s152 = scalar_select %p151, %s19, 1
          %p153 = scmp.lt.s32.totalorder %s150, 1
          %s154 = scalar_select %p153, %s150, 1
          %s155 = smul.addr %s152, 10
          %s156 = sadd.s32 %s154, %s155
          %s157 = smul.addr %s156, 8
          %s158 = scalar_lea.vmem %s0, %s157
          %s159 = smul.u32 2, %s20
        $region28: #{tpu_custom_call.1} parent=23 // pred_fallthru
          _
      $region24: #{tpu_custom_call.1} parent=5 // pred_fallthru
        _
      %p160 = scmp.le.s32.totalorder 1, %s12
      %p161 = scmp.lt.s32.totalorder %s12, 3
      %p162 = pnand %p160, %p161
      %p163 = pneg %p162
      // Predicated region
      $region29: #{tpu_custom_call.1} parent=5 // pred_check
        _
      $region30: #{tpu_custom_call.1} parent=5 // pred_check_branch
        %165 = sbr.rel (%p162) target = $region32
      $region31: #{tpu_custom_call.1} parent=5 // pred_region
        %s166 = ssub.s32 %s12, 1
        %s167 = smul.u32 2, %s22
        %p168 = scmp.lt.s32.totalorder %s21, 1
        %s169 = scalar_select %p168, %s21, 1
        %p170 = scmp.lt.s32.totalorder %s167, 1
        %s171 = scalar_select %p170, %s167, 1
        %s172 = smul.addr %s169, 10
        %s173 = sadd.s32 %s171, %s172
        %s174 = smul.addr %s173, 8
        %s175 = scalar_lea.vmem %s0, %s174
        %p176 = pneg %p52
        %p177 = pneg %p49
        %p178 = pneg %p73
        %p179 = pneg %p70
        %p180 = pneg %p94
        %p181 = pneg %p91
        %p182 = pneg %p122
        %p183 = pneg %p119
        %s184 = sand.u32 %s109, 1
        %s185 = scalar_lea.sflag [#allocation3], %s184
        %s186 = sand.u32 %s109, 1
        %s187 = smul.addr %s186, 16
        %s188 = scalar_lea.vmem [#allocation2], %s187
        %s189 = smul.u32 2, %s22
        %p190 = scmp.lt.s32.totalorder %s21, 1
        %s191 = scalar_select %p190, %s21, 1
        %p192 = scmp.lt.s32.totalorder %s189, 1
        %s193 = scalar_select %p192, %s189, 1
        %s194 = smul.addr %s191, 10
        %s195 = sadd.s32 %s193, %s194
        %s196 = smul.addr %s195, 8
        %s197 = scalar_lea.vmem %s0, %s196
        %s198 = smul.u32 2, %s22
        %s199 = smul.u32 2, %s22
        %v200 = vld [vmem:[%s1] sm:$0xff]
        %v201 = vld [vmem:[%s197] sm:$0xff]
        %v202 = vld [vmem:[%s197 + $0x8] sm:$0xff]
        %v203 = vld [vmem:[%s197 + $0x10] sm:$0xff]
        %v204 = vld [vmem:[%s197 + $0x18] sm:$0xff]
        %v205 = vld [vmem:[%s197 + $0x20] sm:$0xff]
        %v206 = vld [vmem:[%s197 + $0x28] sm:$0xff]
        %v207 = vld [vmem:[%s197 + $0x30] sm:$0xff]
        %v208 = vld [vmem:[%s197 + $0x38] sm:$0xff]
        %v209 = vld [vmem:[%s197 + $0x40] sm:$0xf]
        %v210 = vld [vmem:[%s197 + $0x48] sm:$0xf]
        %v211 = vld [vmem:[%s2] sm:$0xff]
        %213 = vset.pattern.permute.xlu0 0
        %214 = vperm.xlu0 %213, %v211
        %v215 = vpop.permute.xlu0 %214
        %vm217 = vcmask 293888
        %v219 = vsel %vm217, %v200, 0
        %vm221 = vcmask 1043456
        %v223 = vsel %vm221, %v209, 0
        %v226 = vsel %vm221, %v210, 0
        %228 = vmatprep.subr.mxu0 %v202
        %229 = vmatpush1.msra.mxu0 %v201
        %230 = vmatprep.subr.mxu0 %v204
        %231 = vmatpush1.msra.mxu0 %v203
        %232 = vmatprep.subr.mxu0 %v206
        %233 = vmatpush1.msra.mxu0 %v205
        %234 = vmatprep.subr.mxu0 %v208
        %235 = vmatpush1.msra.mxu0 %v207
        %236 = vmatprep.subr.mxu0 %v226
        %237 = vmatpush1.msra.mxu0 %v223
        %238 = vmatprep.subr.mxu0 0.0
        %239 = vmatpush1.msra.mxu0 0.0
        %240 = vmatprep.subr.mxu0 0.0
        %241 = vmatpush1.msra.mxu0 0.0
        %242 = vmatprep.subr.mxu0 0.0
        %243 = vmatpush1.msra.mxu0 0.0
        %244 = vmatprep.subr.mxu0 0.0
        %245 = vmatpush1.msra.mxu0 0.0
        %246 = vmatprep.subr.mxu0 0.0
        %247 = vmatpush1.msra.mxu0 0.0
        %248 = vmatprep.subr.mxu0 0.0
        %249 = vmatpush1.msra.mxu0 0.0
        %250 = vmatprep.subr.mxu0 0.0
        %251 = vmatpush1.msra.mxu0 0.0
        %252 = vmatprep.subr.mxu0 0.0
        %253 = vmatpush1.msra.mxu0 0.0
        %254 = vmatprep.subr.mxu0 0.0
        %255 = vmatpush1.msra.mxu0 0.0
        %256 = vmatprep.subr.mxu0 0.0
        %257 = vmatpush1.msra.mxu0 0.0
        %258 = vmatprep.subr.mxu0 0.0
        %259 = vmatpush1.msra.mxu0 0.0
        %260 = vmatprep.subr.mxu0 0.0
        %261 = vmatpush1.msra.mxu0 0.0
        %262 = vmatprep.subr.mxu0 0.0
        %263 = vmatpush1.msra.mxu0 0.0
        %264 = vmatprep.subr.mxu0 0.0
        %265 = vmatpush1.msra.mxu0 0.0
        %266 = vmatprep.subr.mxu0 0.0
        %267 = vmatpush1.msra.mxu0 0.0
        %268 = vmatprep.subr.mxu0 0.0
        %269 = vmatpush1.msra.mxu0 0.0
        %270 = vmatprep.subr.mxu0 0.0
        %271 = vmatpush1.msra.mxu0 0.0
        %272 = vmatprep.subr.mxu0 0.0
        %273 = vmatpush1.msra.mxu0 0.0
        %274 = vmatprep.subr.mxu0 0.0
        %275 = vmatpush1.msra.mxu0 0.0
        %276 = vmatprep.subr.mxu0 0.0
        %277 = vmatpush1.msra.mxu0 0.0
        %278 = vmatprep.subr.mxu0 0.0
        %279 = vmatpush1.msra.mxu0 0.0
        %280 = vmatprep.subr.mxu0 0.0
        %281 = vmatpush1.msra.mxu0 0.0
        %282 = vmatprep.subr.mxu0 0.0
        %283 = vmatpush1.msra.mxu0 0.0
        %284 = vmatprep.subr.mxu0 0.0
        %285 = vmatpush1.msra.mxu0 0.0
        %286 = vmatprep.subr.mxu0 0.0
        %287 = vmatpush1.msra.mxu0 0.0
        %288 = vmatprep.subr.mxu0 0.0
        %289 = vmatpush1.msra.mxu0 0.0
        %290 = vmatprep.subr.mxu0 0.0
        %291 = vmatpush1.msra.mxu0 0.0
        %292 = vmatprep.mubr.f32.mxu0 0.0
        %293 = vmatmul.mubr.f32.gmra.mrb[0].mxu0 %v219
        %v294 = vpop.f32.mrb[0].mxu0
        %v295 = vadd.f32 %v215, %v294
        %v296 = vpop.f32.mrb[0].mxu0
        %v297 = vadd.f32 %v215, %v296
        %298 = vdwg.mxu0
        %v299 = vmul.f32 %v295, 0.5
        %v300 = vmul.f32 %v297, 0.5
        %v301 = vmul.f32 %v295, 0.70710677
        %v302 = vmul.f32 %v297, 0.70710677
        %v303 = vand.u32 2147483647, %v301
        %v304 = vand.u32 2147483647, %v302
        %v305 = vmul.f32 %v303, 0.3275911
        %v306 = vmul.f32 %v304, 0.3275911
        %v307 = vadd.f32 %v305, 1.0
        %v308 = vadd.f32 %v306, 1.0
        %v309 = vrcp.pop %v307
        %v310 = vmul.f32 1.0, %v309
        %v311 = vrcp.pop %v308
        %v312 = vmul.f32 1.0, %v311
        %v313 = vmul.f32 %v310, 1.0614054
        %v314 = vmul.f32 %v312, 1.0614054
        %v315 = vadd.f32 %v313, -1.4531521
        %v316 = vadd.f32 %v314, -1.4531521
        %v317 = vmul.f32 %v310, %v315
        %v318 = vmul.f32 %v312, %v316
        %v319 = vadd.f32 %v317, 1.4214138
        %v320 = vadd.f32 %v318, 1.4214138
        %v321 = vmul.f32 %v310, %v319
        %v322 = vmul.f32 %v312, %v320
        %v323 = vadd.f32 %v321, -0.28449672
        %v324 = vadd.f32 %v322, -0.28449672
        %v325 = vmul.f32 %v310, %v323
        %v326 = vmul.f32 %v312, %v324
        %v327 = vadd.f32 %v325, 0.2548296
        %v328 = vadd.f32 %v326, 0.2548296
        %v329 = vmul.f32 %v310, %v327
        %v330 = vmul.f32 %v312, %v328
        %v331 = vsub.f32 0.0, %v303
        %v332 = vsub.f32 0.0, %v304
        %v333 = vmul.f32 %v331, %v303
        %v334 = vmul.f32 %v332, %v304
        %v335 = vmul.f32 %v333, 1.442695
        %v336 = vpow.pop %v335
        %v337 = vmul.f32 %v334, 1.442695
        %v338 = vpow.pop %v337
        %v339 = vmul.f32 %v329, %v336
        %v340 = vmul.f32 %v330, %v338
        %v341 = vsub.f32 1.0, %v339
        %v342 = vsub.f32 1.0, %v340
        %vm343 = vcmp.lt.f32.partialorder %v301, 0.0
        %vm344 = vcmp.lt.f32.partialorder %v302, 0.0
        %v345 = vsub.f32 0.0, %v341
        %v346 = vsub.f32 0.0, %v342
        %v347 = vsel %vm343, %v345, %v341
        %v348 = vsel %vm344, %v346, %v342
        %v349 = vadd.f32 %v347, 1.0
        %v350 = vadd.f32 %v348, 1.0
        %v351 = vmul.f32 %v299, %v349
        %v352 = vmul.f32 %v300, %v350
        %353 = vst [vmem:[%s188] sm:$0xff] %v351
        %354 = vst [vmem:[%s188 + $0x8] sm:$0xff] %v352
        %s355 = sand.u32 %s109, 1
        %s356 = scalar_lea.sflag [#allocation3], %s355
        %s357 = sand.u32 %s109, 1
        %s358 = smul.addr %s357, 16
        %s359 = scalar_lea.vmem [#allocation2], %s358
        // Predicated region
        $region33: #{tpu_custom_call.1} parent=31 // pred_check
          %p360 = pneg %p119
        $region34: #{tpu_custom_call.1} parent=31 // pred_check_branch
          %362 = sbr.rel (%p360) target = $region36
        $region35: #{tpu_custom_call.1} parent=31 // pred_region
          %s363 = smul.u32 2, %s22
          %s365 = ssub.s32 256, 256
          %366 = vsyncadd %s356, %s365
          %s367 = smul.addr %s21, 2
          %s368 = sadd.s32 %s363, %s367
          %s369 = smul.addr %s368, 128
          %s370 = scalar_lea.hbm %s3, %s369
          %s372 = sshll.u32 %s359, 4
          %s373 = int_to_ptr.vmem [resolvable:$true] %s372
          %375 = dma.vmem_to_hbm [thread:$0]  %s373, 256, %s370, %s356
        $region36: #{tpu_custom_call.1} parent=31 // pred_fallthru
          _
      $region32: #{tpu_custom_call.1} parent=5 // pred_fallthru
        _
      %p376 = scmp.le.s32.totalorder 2, %s12
      // Predicated region
      $region37: #{tpu_custom_call.1} parent=5 // pred_check
        %p377 = pneg %p376
      $region38: #{tpu_custom_call.1} parent=5 // pred_check_branch
        %379 = sbr.rel (%p377) target = $region40
      $region39: #{tpu_custom_call.1} parent=5 // pred_region
        %s380 = ssub.s32 %s12, 2
        // Predicated region
        $region41: #{tpu_custom_call.1} parent=39 // pred_check
          %p381 = pneg %p125
        $region42: #{tpu_custom_call.1} parent=39 // pred_check_branch
          %383 = sbr.rel (%p381) target = $region44
        $region43: #{tpu_custom_call.1} parent=39 // pred_region
          %s384 = sand.u32 %s110, 1
          %s385 = scalar_lea.sflag [#allocation3], %s384
          %s386 = sand.u32 %s110, 1
          %s387 = smul.addr %s386, 16
          %s388 = scalar_lea.vmem [#allocation2], %s387
          %389 = dma.done %s385, 256
        $region44: #{tpu_custom_call.1} parent=39 // pred_fallthru
          _
      $region40: #{tpu_custom_call.1} parent=5 // pred_fallthru
        _
    $region6: #{tpu_custom_call.1} parent=1 // loop_footer
      %s16 = sadd.s32 1, %s12
    $region7: #{tpu_custom_call.1} parent=1 // loop_footer_branch
      %11 = sbr.rel target = $region3
    $region8: #{tpu_custom_call.1} parent=1 // loop_exit
      _
    %390 = vsyncpa [#allocation3], 1
    %s391 = scalar_lea.sflag [#allocation3], 1
    %392 = vsyncpa %s391, 1

</llo_original>
